<compile_context>
chip_gen: v7x
topology: tpu7x:2x2x1
jax: 0.10.0
libtpu: 0.0.40
codegen_flags: <defaults>
</compile_context>

<pallas_src>
import jax
import jax.numpy as jnp
from jax.experimental import pallas as pl
from jax.experimental.pallas import tpu as pltpu


def _h_swish_kernel(x_ref, o_ref):
    x = x_ref[...]
    # bf16 / f32 compute natively (v6e/v7x have a bf16 VPU); anything else via f32.
    if x.dtype not in (jnp.float32, jnp.bfloat16):
        x = x.astype(jnp.float32)
    y = x * (jnp.clip(x + 3.0, 0.0, 6.0) * (1.0 / 6.0))
    o_ref[...] = y.astype(o_ref.dtype)


def _round_up(a, b):
    return -(-a // b) * b


def _cdiv(a, b):
    return -(-a // b)


_LANE_CANDIDATES = (512, 256, 128)


def h_swish(x, *, max_row_block=2048, inplace=False):
    """Elementwise h_swish (x * relu6(x + 3) / 6) for floating-point arrays."""
    orig_shape = x.shape
    dtype = x.dtype
    n = x.size

    if n == 0:                       # empty input: nothing to do
        return x

    # Pick a lane-dense column width that divides n, avoiding the pad + slice
    # path (each would be a full extra HBM pass for a memory-bound op).
    cols = None
    for c in _LANE_CANDIDATES:
        if n % c == 0:
            cols = c
            break
    if cols is None:
        cols = 128                   # fall back: pad up to a multiple of 128

    rows = _cdiv(n, cols)
    pad = rows * cols - n

    flat = x.reshape(-1)
    if pad:
        flat = jnp.pad(flat, (0, pad))   # h_swish(0) == 0 -> padding is benign
    x2d = flat.reshape(rows, cols)

    # Row-stripe blocks: sublane(8)-aligned, always full lane width.  Keep >= 2
    # blocks whenever possible so the "parallel" axis can use both v7x
    # TensorCores; the ragged final block is handled by Pallas masked stores.
    if rows <= 8:
        row_block = rows                               # single tiny block (== full dim)
    elif rows <= max_row_block:
        row_block = _round_up(_cdiv(rows, 2), 8)       # >= 2 blocks (megacore)
    else:
        row_block = max_row_block
    num_blocks = _cdiv(rows, row_block)

    # 2x double-buffered inputs + 2x outputs + headroom, clamped to the chip's
    # actual VMEM (64 MiB per TensorCore on v7x vs 128 MiB on v5e/v6e).
    block_bytes = row_block * cols * x2d.dtype.itemsize
    try:
        vmem_cap = int(pltpu.get_tpu_info().vmem_capacity_bytes)
    except Exception:
        vmem_cap = 64 * 1024 * 1024
    vmem_limit = min(max(32 * 1024 * 1024, 6 * block_bytes), (vmem_cap * 6) // 10)

    # Mirror PyTorch inplace=True: alias input buffer 0 to output 0 when the
    # layout is unchanged (no padding).  Off by default; only worthwhile when
    # the caller no longer needs the input activation.
    aliases = {0: 0} if (inplace and pad == 0) else {}

    out2d = pl.pallas_call(
        _h_swish_kernel,
        out_shape=jax.ShapeDtypeStruct((rows, cols), dtype),
        grid_spec=pltpu.PrefetchScalarGridSpec(
            num_scalar_prefetch=0,
            grid=(num_blocks,),
            in_specs=[pl.BlockSpec((row_block, cols), lambda i: (i, 0))],
            out_specs=pl.BlockSpec((row_block, cols), lambda i: (i, 0)),
        ),
        compiler_params=pltpu.CompilerParams(
            dimension_semantics=("parallel",),
            vmem_limit_bytes=vmem_limit,
        ),
        input_output_aliases=aliases,
    )(x2d)

    out = out2d.reshape(-1)
    if pad:
        out = out[:n]
    return out.reshape(orig_shape)


def _ref_h_swish(x):
    return x * (jnp.clip(x.astype(jnp.float32) + 3.0, 0.0, 6.0) / 6.0).astype(x.dtype)


if __name__ == "__main__":
    key = jax.random.PRNGKey(0)

    # Primary: small NCHW activation, f32, n divisible by 512 (no-pad path).
    N, C, H, W = 2, 4, 16, 16
    x = jax.random.normal(key, (N, C, H, W), jnp.float32) * 4.0
    ref = _ref_h_swish(x)
    out = jax.block_until_ready(h_swish(x))
    assert out.shape == x.shape
    assert jnp.all(jnp.isfinite(out))
    assert jnp.allclose(out, ref, atol=1e-5, rtol=1e-5)

    # Ragged-grid path: rows=30, row_block=16 -> 2 blocks, last one partial.
    k2 = jax.random.PRNGKey(1)
    x2 = jax.random.normal(k2, (1, 3, 40, 128), jnp.float32) * 4.0
    out2 = jax.block_until_ready(h_swish(x2))
    assert jnp.allclose(out2, _ref_h_swish(x2), atol=1e-5, rtol=1e-5)

    # Pad path: element count not a multiple of 128.
    k3 = jax.random.PRNGKey(2)
    x3 = jax.random.normal(k3, (3, 5, 7), jnp.float32) * 4.0
    out3 = jax.block_until_ready(h_swish(x3))
    assert out3.shape == x3.shape
    assert jnp.allclose(out3, _ref_h_swish(x3), atol=1e-5, rtol=1e-5)

    # bf16 fast path (native bf16 compute in the kernel).
    xb = x.astype(jnp.bfloat16)
    outb = jax.block_until_ready(h_swish(xb))
    assert outb.dtype == jnp.bfloat16
    assert jnp.allclose(outb.astype(jnp.float32), _ref_h_swish(x), atol=5e-2, rtol=5e-2)

    print("KERNEL_OK")
</pallas_src>

<mosaic_0001>
module attributes {stable_mosaic.version = 11 : i64} {
  func.func @_h_swish_kernel(%arg0: i32, %arg1: memref<4x512xf32, #tpu.memory_space<vmem>>, %arg2: memref<4x512xf32, #tpu.memory_space<vmem>>) attributes {dimension_semantics = [#tpu.dimension_semantics<parallel>], iteration_bounds = array<i64: 1>, scalar_prefetch = 0 : i64, scratch_operands = 0 : i64, tpu.core_type = #tpu.core_type<tc>, window_params = [{transform_indices = @transform_0, window_bounds = array<i64: 4, 512>}, {transform_indices = @transform_1, window_bounds = array<i64: 4, 512>}]} {
    %c0 = arith.constant 0 : index
    %c0_0 = arith.constant 0 : index
    %0 = vector.load %arg1[%c0, %c0_0] : memref<4x512xf32, #tpu.memory_space<vmem>>, vector<4x512xf32>
    %cst = arith.constant 3.000000e+00 : f32
    %1 = vector.broadcast %cst : f32 to vector<4x512xf32>
    %2 = arith.addf %0, %1 : vector<4x512xf32>
    %cst_1 = arith.constant 0.000000e+00 : f32
    %cst_2 = arith.constant 6.000000e+00 : f32
    %3 = vector.broadcast %cst_1 : f32 to vector<4x512xf32>
    %4 = arith.maximumf %3, %2 : vector<4x512xf32>
    %5 = vector.broadcast %cst_2 : f32 to vector<4x512xf32>
    %6 = arith.minimumf %5, %4 : vector<4x512xf32>
    %cst_3 = arith.constant 0.166666672 : f32
    %7 = vector.broadcast %cst_3 : f32 to vector<4x512xf32>
    %8 = arith.mulf %6, %7 : vector<4x512xf32>
    %9 = arith.mulf %0, %8 : vector<4x512xf32>
    %c0_4 = arith.constant 0 : index
    %c0_5 = arith.constant 0 : index
    %10 = vector.load %arg2[%c0_4, %c0_5] : memref<4x512xf32, #tpu.memory_space<vmem>>, vector<4x512xf32>
    tpu.vector_store %arg2[%c0_4, %c0_5], %9 {strides = array<i32>} : memref<4x512xf32, #tpu.memory_space<vmem>>, vector<4x512xf32>,
    return
  }
  func.func @transform_0(%arg0: i32) -> (i32, i32) {
    %c0_i32 = arith.constant 0 : i32
    %c0_i32_0 = arith.constant 0 : i32
    return %arg0, %c0_i32 : i32, i32
  }
  func.func @transform_1(%arg0: i32) -> (i32, i32) {
    %c0_i32 = arith.constant 0 : i32
    %c0_i32_0 = arith.constant 0 : i32
    return %arg0, %c0_i32 : i32, i32
  }
}

</mosaic_0001>

<llo_original>
// kernel: tpu_custom_call.1
$region0: #{tpu_custom_call.1}
  #allocation0 [shape = 'u32[]', space=smem, size = 0x4, offset = 0x4, fixed_abs, tag = 'smem constant byte address 0x4 - core index']
  #allocation1 [shape = 'u32[144,128]{1,0:T(1,128)}', space=vmem, size = 0x12000, scoped, tag = 'internal scratch']
  %s0 = inlined_call_operand.hbm [shape: f32[4,512], index: 0, kind: input, shape index: {}]
  %s1 = inlined_call_operand.hbm [shape: f32[4,512], index: 1, kind: output, shape index: {}]
  %s2 = sld [smem:[#allocation0]]
  $region18: #{tpu_custom_call.1} parent=0
    _
  %s4 = ssub.s32 1, %s2
  %s5 = scalar_select 0, %s4, %s2
  $region1: #{tpu_custom_call.1} parent=0
    #allocation2 [shape = 'u8[8192]{0}', space=vmem, size = 0x2000, scoped, tag = 'input window, operand 0, single buffered']
    #allocation3 [shape = 's32[1]{0}', space=sflag, size = 0x4, scoped, tag = 'scoped memory for tpu_custom_call.1']
    #allocation4 [shape = 's32[1]{0}', space=sflag, size = 0x4, scoped, tag = 'scoped memory for tpu_custom_call.1']
    #allocation5 [shape = 'u8[8192]{0}', space=vmem, size = 0x2000, scoped, tag = 'output window, operand 0, single buffered']
    %6 = vsyncpa [#allocation3], 0
    %7 = vsyncpa [#allocation4], 0
    // Predicated region
    $region2: #{tpu_custom_call.1} parent=1 // pred_check
      _
    $region3: #{tpu_custom_call.1} parent=1 // pred_check_branch
      %9 = sbr.rel (0) target = $region5
    $region4: #{tpu_custom_call.1} parent=1 // pred_region
      %s11 = ssub.s32 256, 256
      %12 = vsyncadd [#allocation3], %s11
      %s14 = sshll.u32 [#allocation2], 4
      %s15 = int_to_ptr.vmem [resolvable:$true] %s14
      %17 = dma.hbm_to_vmem [thread:$0]  %s0, 256, %s15, [#allocation3]
    $region5: #{tpu_custom_call.1} parent=1 // pred_fallthru
      _
    // Predicated region
    $region6: #{tpu_custom_call.1} parent=1 // pred_check
      _
    $region7: #{tpu_custom_call.1} parent=1 // pred_check_branch
      %19 = sbr.rel (0) target = $region9
    $region8: #{tpu_custom_call.1} parent=1 // pred_region
      %20 = dma.done [#allocation3], 256
    $region9: #{tpu_custom_call.1} parent=1 // pred_fallthru
      _
    %v21 = vld [vmem:[#allocation2] sm:$0xff]
    %v22 = vld [vmem:[#allocation2 + $0x8] sm:$0xff]
    %v23 = vadd.f32 %v21, 3.0
    %v24 = vadd.f32 %v22, 3.0
    %v25 = vmax.f32 %v23, 0.0
    %v26 = vmax.f32 %v24, 0.0
    %v27 = vmin.f32 %v25, 6.0
    %v28 = vmin.f32 %v26, 6.0
    %v29 = vmul.f32 %v27, 0.16666667
    %v30 = vmul.f32 %v28, 0.16666667
    %v31 = vmul.f32 %v21, %v29
    %v32 = vmul.f32 %v22, %v30
    %33 = vst [vmem:[#allocation5] sm:$0xff] %v31
    %34 = vst [vmem:[#allocation5 + $0x8] sm:$0xff] %v32
    // Predicated region
    $region10: #{tpu_custom_call.1} parent=1 // pred_check
      _
    $region11: #{tpu_custom_call.1} parent=1 // pred_check_branch
      %36 = sbr.rel (0) target = $region13
    $region12: #{tpu_custom_call.1} parent=1 // pred_region
      %s38 = ssub.s32 256, 256
      %39 = vsyncadd [#allocation4], %s38
      %s41 = sshll.u32 [#allocation5], 4
      %s42 = int_to_ptr.vmem [resolvable:$true] %s41
      %44 = dma.vmem_to_hbm [thread:$0]  %s42, 256, %s1, [#allocation4]
    $region13: #{tpu_custom_call.1} parent=1 // pred_fallthru
      _
    // Predicated region
    $region14: #{tpu_custom_call.1} parent=1 // pred_check
      _
    $region15: #{tpu_custom_call.1} parent=1 // pred_check_branch
      %46 = sbr.rel (0) target = $region17
    $region16: #{tpu_custom_call.1} parent=1 // pred_region
      %47 = dma.done [#allocation4], 256
    $region17: #{tpu_custom_call.1} parent=1 // pred_fallthru
      _
    %48 = vsyncpa [#allocation3], 1
    %49 = vsyncpa [#allocation4], 1

</llo_original>
